<compile_context>
chip_gen: v7x
topology: tpu7x:2x2x1
jax: 0.10.0
libtpu: 0.0.40
codegen_flags: <defaults>
</compile_context>

<pallas_src>
import jax
import jax.numpy as jnp
from jax import lax
from jax.experimental import pallas as pl
from jax.experimental.pallas import tpu as pltpu


def _attention_mil_kernel(x_ref, v_ref, u_ref, w_ref, bag_ref, attn_ref):
    # x_ref   : (Bt, N, D)  tile of Bt bags
    # v_ref   : (H, D)      V weight (torch layout: out x in)
    # u_ref   : (H, D)      U weight
    # w_ref   : (1, H)      w weight
    # bag_ref : (Bt, 1, D)  bag representations (x.dtype)
    # attn_ref: (Bt, 1, N)  attention weights (float32)
    x = x_ref[...]
    Bt, N, D = x.shape
    H = v_ref.shape[0]

    # Bag-independent projections on the flattened (Bt*N, D) slab: one big MXU
    # pass instead of Bt tiny ones.  Contract the in_features axis (x @ W^T).
    xf = x.reshape(Bt * N, D)                      # lane dim (D) untouched
    dn = (((1,), (1,)), ((), ()))
    vh = jnp.tanh(
        lax.dot_general(xf, v_ref[...], dn, preferred_element_type=jnp.float32))
    uh = jax.nn.sigmoid(
        lax.dot_general(xf, u_ref[...], dn, preferred_element_type=jnp.float32))
    gated = (vh * uh).reshape(Bt, N, H)            # (Bt, N, H), f32 accumulators

    # Lane-major logits: (Bt, 1, H) x (Bt, N, H) -> (Bt, 1, N), instances on lanes.
    w_b = jnp.broadcast_to(
        w_ref[...].astype(jnp.float32).reshape(1, 1, H), (Bt, 1, H))
    logits = jnp.einsum("boh,bnh->bon", w_b, gated,
                        preferred_element_type=jnp.float32)     # (Bt, 1, N)

    # Softmax over the instance (lane) axis.
    m = jnp.max(logits, axis=-1, keepdims=True)                 # (Bt, 1, 1)
    e = jnp.exp(logits - m)                                     # (Bt, 1, N)
    denom = jnp.sum(e, axis=-1, keepdims=True)                  # (Bt, 1, 1)
    attn = e * pl.reciprocal(denom, approx=True)                # (Bt, 1, N), f32
    attn_ref[...] = attn.astype(attn_ref.dtype)                 # lane-dense store

    # Bag aggregation on the MXU: (Bt, 1, N) @ (Bt, N, D) -> (Bt, 1, D).
    bag = jnp.einsum("bon,bnd->bod", attn.astype(x.dtype), x,
                     preferred_element_type=jnp.float32)
    bag_ref[...] = bag.astype(bag_ref.dtype)


def attention_mil_forward(x, v_w, u_w, w_w, *, bags_per_step=None):
    """x: (B, N, D); v_w, u_w: (H, D); w_w: (1, H) -> (bag (B, D), attn (B, N) f32)."""
    B, N, D = x.shape
    H = v_w.shape[0]

    if bags_per_step is None:
        # Aim for >=256 projected rows (Bt*N) per grid step: fills the 256x256
        # MXU on v6e/v7x (128x128 on v5e) and amortizes per-step overhead.
        bags_per_step = max(1, min(B, pl.cdiv(256, max(N, 1))))
    Bt = int(bags_per_step)
    grid = (pl.cdiv(B, Bt),)

    bag3, attn3 = pl.pallas_call(
        _attention_mil_kernel,
        out_shape=(
            jax.ShapeDtypeStruct((B, 1, D), x.dtype),
            jax.ShapeDtypeStruct((B, 1, N), jnp.float32),
        ),
        grid=grid,
        in_specs=[
            pl.BlockSpec((Bt, N, D), lambda b: (b, 0, 0)),   # tile of Bt bags
            pl.BlockSpec((H, D), lambda b: (0, 0)),          # V (replicated)
            pl.BlockSpec((H, D), lambda b: (0, 0)),          # U (replicated)
            pl.BlockSpec((1, H), lambda b: (0, 0)),          # w (replicated)
        ],
        out_specs=(
            pl.BlockSpec((Bt, 1, D), lambda b: (b, 0, 0)),
            pl.BlockSpec((Bt, 1, N), lambda b: (b, 0, 0)),
        ),
        compiler_params=pltpu.CompilerParams(
            # Bag axis is embarrassingly parallel -> both TensorCores on v7x;
            # near-neutral on v5e/v6e.
            dimension_semantics=("parallel",),
        ),
    )(x, v_w, u_w, w_w)

    return bag3[:, 0, :], attn3[:, 0, :]


def _reference_forward(x, v_w, u_w, w_w):
    vh = jnp.tanh(jnp.einsum("bnd,hd->bnh", x, v_w))
    uh = jax.nn.sigmoid(jnp.einsum("bnd,hd->bnh", x, u_w))
    gated = vh * uh
    logits = jnp.einsum("bnh,oh->bno", gated, w_w)[..., 0]
    attn = jax.nn.softmax(logits, axis=1)
    bag = jnp.sum(attn[..., None] * x, axis=1)
    return bag, attn


if __name__ == "__main__":
    # Small shapes consistent with the module: (batch, num_instances, input_size)
    B, N, D, H = 2, 8, 16, 32

    key = jax.random.PRNGKey(0)
    kx, kv, ku, kw = jax.random.split(key, 4)

    x = jax.random.normal(kx, (B, N, D), dtype=jnp.float32)
    # Deterministic synthetic weights (torch nn.Linear layout: (out, in)); the
    # module uses bias=False for V, U and w, so no biases are needed.
    v_w = jax.random.normal(kv, (H, D), dtype=jnp.float32) * (1.0 / jnp.sqrt(D))
    u_w = jax.random.normal(ku, (H, D), dtype=jnp.float32) * (1.0 / jnp.sqrt(D))
    w_w = jax.random.normal(kw, (1, H), dtype=jnp.float32) * (1.0 / jnp.sqrt(H))

    bag, attn = attention_mil_forward(x, v_w, u_w, w_w)
    jax.block_until_ready((bag, attn))

    bag_ref, attn_ref = _reference_forward(x, v_w, u_w, w_w)
    assert bag.shape == (B, D) and attn.shape == (B, N)
    # approx=True reciprocal in the softmax -> compare with ~1e-3 tolerance.
    assert jnp.allclose(attn, attn_ref, atol=2e-3, rtol=2e-3)
    assert jnp.allclose(bag, bag_ref, atol=2e-3, rtol=2e-3)
    # Attention rows must still sum to ~1.
    assert jnp.allclose(jnp.sum(attn, axis=1), 1.0, atol=2e-3)

    print("KERNEL_OK")
</pallas_src>

<mosaic_0001>
module attributes {stable_mosaic.version = 11 : i64} {
  func.func @_attention_mil_kernel(%arg0: i32, %arg1: memref<2x8x16xf32, #tpu.memory_space<vmem>>, %arg2: memref<32x16xf32, #tpu.memory_space<vmem>>, %arg3: memref<32x16xf32, #tpu.memory_space<vmem>>, %arg4: memref<1x32xf32, #tpu.memory_space<vmem>>, %arg5: memref<2x1x16xf32, #tpu.memory_space<vmem>>, %arg6: memref<2x1x8xf32, #tpu.memory_space<vmem>>) attributes {dimension_semantics = [#tpu.dimension_semantics<parallel>], iteration_bounds = array<i64: 1>, scalar_prefetch = 0 : i64, scratch_operands = 0 : i64, tpu.core_type = #tpu.core_type<tc>, window_params = [{transform_indices = @transform_0, window_bounds = array<i64: 2, 8, 16>}, {pipeline_mode = #tpu.pipeline_mode<synchronous>, transform_indices = @transform_1, window_bounds = array<i64: 32, 16>}, {pipeline_mode = #tpu.pipeline_mode<synchronous>, transform_indices = @transform_2, window_bounds = array<i64: 32, 16>}, {pipeline_mode = #tpu.pipeline_mode<synchronous>, transform_indices = @transform_3, window_bounds = array<i64: 1, 32>}, {transform_indices = @transform_4, window_bounds = array<i64: 2, 1, 16>}, {transform_indices = @transform_5, window_bounds = array<i64: 2, 1, 8>}]} {
    %c0 = arith.constant 0 : index
    %c0_0 = arith.constant 0 : index
    %c0_1 = arith.constant 0 : index
    %0 = vector.load %arg1[%c0, %c0_0, %c0_1] : memref<2x8x16xf32, #tpu.memory_space<vmem>>, vector<2x8x16xf32>
    %1 = vector.shape_cast %0 : vector<2x8x16xf32> to vector<16x16xf32>
    %c0_2 = arith.constant 0 : index
    %c0_3 = arith.constant 0 : index
    %2 = vector.load %arg2[%c0_2, %c0_3] : memref<32x16xf32, #tpu.memory_space<vmem>>, vector<32x16xf32>
    %cst = arith.constant dense<0.000000e+00> : vector<16x32xf32>
    %3 = tpu.matmul %1, %2, %cst {dimension_numbers = #tpu.dot_dimension_numbers<[1], [1], [0], [0], [0, 0, 1, 0], [], []>} : vector<16x16xf32>, vector<32x16xf32>, vector<16x32xf32> -> vector<16x32xf32>
    %4 = math.tanh %3 : vector<16x32xf32>
    %c0_4 = arith.constant 0 : index
    %c0_5 = arith.constant 0 : index
    %5 = vector.load %arg3[%c0_4, %c0_5] : memref<32x16xf32, #tpu.memory_space<vmem>>, vector<32x16xf32>
    %cst_6 = arith.constant dense<0.000000e+00> : vector<16x32xf32>
    %6 = tpu.matmul %1, %5, %cst_6 {dimension_numbers = #tpu.dot_dimension_numbers<[1], [1], [0], [0], [0, 0, 1, 0], [], []>} : vector<16x16xf32>, vector<32x16xf32>, vector<16x32xf32> -> vector<16x32xf32>
    %7 = arith.negf %6 : vector<16x32xf32>
    %8 = math.exp %7 : vector<16x32xf32>
    %cst_7 = arith.constant 1.000000e+00 : f32
    %9 = vector.broadcast %cst_7 : f32 to vector<16x32xf32>
    %10 = arith.addf %9, %8 : vector<16x32xf32>
    %11 = arith.divf %9, %10 : vector<16x32xf32>
    %12 = arith.mulf %4, %11 : vector<16x32xf32>
    %13 = vector.shape_cast %12 : vector<16x32xf32> to vector<2x8x32xf32>
    %c0_8 = arith.constant 0 : index
    %c0_9 = arith.constant 0 : index
    %14 = vector.load %arg4[%c0_8, %c0_9] : memref<1x32xf32, #tpu.memory_space<vmem>>, vector<1x32xf32>
    %15 = vector.shape_cast %14 : vector<1x32xf32> to vector<1x1x32xf32>
    %16 = vector.shape_cast %15 : vector<1x1x32xf32> to vector<1x1x32xf32>
    %17 = vector.broadcast %16 : vector<1x1x32xf32> to vector<2x1x32xf32>
    "tpu.trace_start"() <{level = 10 : i32, message = "boh,bnh->bon"}> : () -> ()
    %cst_10 = arith.constant dense<0.000000e+00> : vector<2x1x8xf32>
    %18 = tpu.matmul %17, %13, %cst_10 {dimension_numbers = #tpu.dot_dimension_numbers<[2], [2], [1], [1], [0, 0, 0, 1, 1, 1], [0], [0]>} : vector<2x1x32xf32>, vector<2x8x32xf32>, vector<2x1x8xf32> -> vector<2x1x8xf32>
    "tpu.trace_stop"() : () -> ()
    %cst_11 = arith.constant dense<0xFF800000> : vector<2x1xf32>
    %19 = vector.multi_reduction <maximumf>, %18, %cst_11 [2] : vector<2x1x8xf32> to vector<2x1xf32>
    %20 = vector.shape_cast %19 : vector<2x1xf32> to vector<2x1x1xf32>
    %21 = vector.broadcast %20 : vector<2x1x1xf32> to vector<2x1x8xf32>
    %22 = arith.subf %18, %21 : vector<2x1x8xf32>
    %23 = math.exp %22 : vector<2x1x8xf32>
    %cst_12 = arith.constant dense<0.000000e+00> : vector<2x1xf32>
    %24 = vector.multi_reduction <add>, %23, %cst_12 [2] : vector<2x1x8xf32> to vector<2x1xf32>
    %25 = vector.shape_cast %24 : vector<2x1xf32> to vector<2x1x1xf32>
    %26 = tpu.reciprocal %25 {approx = true} : vector<2x1x1xf32> -> vector<2x1x1xf32>
    %27 = vector.broadcast %26 : vector<2x1x1xf32> to vector<2x1x8xf32>
    %28 = arith.mulf %23, %27 : vector<2x1x8xf32>
    %c0_13 = arith.constant 0 : index
    %c0_14 = arith.constant 0 : index
    %c0_15 = arith.constant 0 : index
    %29 = vector.load %arg6[%c0_13, %c0_14, %c0_15] : memref<2x1x8xf32, #tpu.memory_space<vmem>>, vector<2x1x8xf32>
    tpu.vector_store %arg6[%c0_13, %c0_14, %c0_15], %28 {strides = array<i32>} : memref<2x1x8xf32, #tpu.memory_space<vmem>>, vector<2x1x8xf32>,
    "tpu.trace_start"() <{level = 10 : i32, message = "bon,bnd->bod"}> : () -> ()
    %cst_16 = arith.constant dense<0.000000e+00> : vector<2x1x16xf32>
    %30 = tpu.matmul %28, %0, %cst_16 {dimension_numbers = #tpu.dot_dimension_numbers<[2], [1], [1], [2], [0, 0, 0, 1, 1, 2], [0], [0]>} : vector<2x1x8xf32>, vector<2x8x16xf32>, vector<2x1x16xf32> -> vector<2x1x16xf32>
    "tpu.trace_stop"() : () -> ()
    %c0_17 = arith.constant 0 : index
    %c0_18 = arith.constant 0 : index
    %c0_19 = arith.constant 0 : index
    %31 = vector.load %arg5[%c0_17, %c0_18, %c0_19] : memref<2x1x16xf32, #tpu.memory_space<vmem>>, vector<2x1x16xf32>
    tpu.vector_store %arg5[%c0_17, %c0_18, %c0_19], %30 {strides = array<i32>} : memref<2x1x16xf32, #tpu.memory_space<vmem>>, vector<2x1x16xf32>,
    return
  }
  func.func @transform_0(%arg0: i32) -> (i32, i32, i32) {
    %c0_i32 = arith.constant 0 : i32
    %c0_i32_0 = arith.constant 0 : i32
    %c0_i32_1 = arith.constant 0 : i32
    return %arg0, %c0_i32, %c0_i32_0 : i32, i32, i32
  }
  func.func @transform_1(%arg0: i32) -> (i32, i32) {
    %c0_i32 = arith.constant 0 : i32
    %c0_i32_0 = arith.constant 0 : i32
    %c0_i32_1 = arith.constant 0 : i32
    return %c0_i32, %c0_i32_0 : i32, i32
  }
  func.func @transform_2(%arg0: i32) -> (i32, i32) {
    %c0_i32 = arith.constant 0 : i32
    %c0_i32_0 = arith.constant 0 : i32
    %c0_i32_1 = arith.constant 0 : i32
    return %c0_i32, %c0_i32_0 : i32, i32
  }
  func.func @transform_3(%arg0: i32) -> (i32, i32) {
    %c0_i32 = arith.constant 0 : i32
    %c0_i32_0 = arith.constant 0 : i32
    %c0_i32_1 = arith.constant 0 : i32
    return %c0_i32, %c0_i32_0 : i32, i32
  }
  func.func @transform_4(%arg0: i32) -> (i32, i32, i32) {
    %c0_i32 = arith.constant 0 : i32
    %c0_i32_0 = arith.constant 0 : i32
    %c0_i32_1 = arith.constant 0 : i32
    return %arg0, %c0_i32, %c0_i32_0 : i32, i32, i32
  }
  func.func @transform_5(%arg0: i32) -> (i32, i32, i32) {
    %c0_i32 = arith.constant 0 : i32
    %c0_i32_0 = arith.constant 0 : i32
    %c0_i32_1 = arith.constant 0 : i32
    return %arg0, %c0_i32, %c0_i32_0 : i32, i32, i32
  }
}

</mosaic_0001>

<llo_original>
// kernel: tpu_custom_call.1
$region0: #{tpu_custom_call.1}
  #allocation0 [shape = 'u32[]', space=smem, size = 0x4, offset = 0x4, fixed_abs, tag = 'smem constant byte address 0x4 - core index']
  #allocation1 [shape = 'u32[144,128]{1,0:T(1,128)}', space=vmem, size = 0x12000, scoped, tag = 'internal scratch']
  %s0 = inlined_call_operand.vmem [shape: f32[2,8,16], index: 0, kind: input, shape index: {}]
  %s1 = inlined_call_operand.vmem [shape: f32[32,16], index: 1, kind: input, shape index: {}]
  %s2 = inlined_call_operand.vmem [shape: f32[32,16], index: 2, kind: input, shape index: {}]
  %s3 = inlined_call_operand.vmem [shape: f32[1,32], index: 3, kind: input, shape index: {}]
  %s4 = inlined_call_operand.hbm [shape: f32[2,1,16], index: 4, kind: output, shape index: {0}]
  %s5 = inlined_call_operand.hbm [shape: f32[2,1,8], index: 5, kind: output, shape index: {1}]
  %6 = xla_tuple %s4, %s5
  %s7 = sld [smem:[#allocation0]]
  $region34: #{tpu_custom_call.1} parent=0
    _
  %s9 = ssub.s32 1, %s7
  %s10 = scalar_select 0, %s9, %s7
  $region1: #{tpu_custom_call.1} parent=0
    #allocation2 [shape = 'u8[1024]{0}', space=vmem, size = 0x400, scoped, tag = 'output window, operand 0, single buffered']
    #allocation3 [shape = 's32[1]{0}', space=sflag, size = 0x4, scoped, tag = 'scoped memory for tpu_custom_call.1']
    #allocation4 [shape = 'u8[1024]{0}', space=vmem, size = 0x400, scoped, tag = 'output window, operand 1, single buffered']
    #allocation5 [shape = 's32[1]{0}', space=sflag, size = 0x4, scoped, tag = 'scoped memory for tpu_custom_call.1']
    %11 = vsyncpa [#allocation3], 0
    %12 = vsyncpa [#allocation5], 0
    // Predicated region
    $region2: #{tpu_custom_call.1} parent=1 // pred_check
      _
    $region3: #{tpu_custom_call.1} parent=1 // pred_check_branch
      %14 = sbr.rel (0) target = $region5
    $region4: #{tpu_custom_call.1} parent=1 // pred_region
      _
    $region5: #{tpu_custom_call.1} parent=1 // pred_fallthru
      _
    // Predicated region
    $region6: #{tpu_custom_call.1} parent=1 // pred_check
      _
    $region7: #{tpu_custom_call.1} parent=1 // pred_check_branch
      %16 = sbr.rel (0) target = $region9
    $region8: #{tpu_custom_call.1} parent=1 // pred_region
      _
    $region9: #{tpu_custom_call.1} parent=1 // pred_fallthru
      _
    // Predicated region
    $region10: #{tpu_custom_call.1} parent=1 // pred_check
      _
    $region11: #{tpu_custom_call.1} parent=1 // pred_check_branch
      %18 = sbr.rel (0) target = $region13
    $region12: #{tpu_custom_call.1} parent=1 // pred_region
      _
    $region13: #{tpu_custom_call.1} parent=1 // pred_fallthru
      _
    // Predicated region
    $region14: #{tpu_custom_call.1} parent=1 // pred_check
      _
    $region15: #{tpu_custom_call.1} parent=1 // pred_check_branch
      %20 = sbr.rel (0) target = $region17
    $region16: #{tpu_custom_call.1} parent=1 // pred_region
      _
    $region17: #{tpu_custom_call.1} parent=1 // pred_fallthru
      _
    %v21 = vld [vmem:[%s0] sm:$0xff]
    %v22 = vld [vmem:[%s0 + $0x8] sm:$0xff]
    %v23 = vld [vmem:[%s1] sm:$0xff]
    %v24 = vld [vmem:[%s1 + $0x8] sm:$0xff]
    %v25 = vld [vmem:[%s1 + $0x10] sm:$0xff]
    %v26 = vld [vmem:[%s1 + $0x18] sm:$0xff]
    %vm27 = vcmask 130048
    %v29 = vsel %vm27, %v21, 0
    %v32 = vsel %vm27, %v22, 0
    %v35 = vsel %vm27, %v23, 0
    %v38 = vsel %vm27, %v24, 0
    %v41 = vsel %vm27, %v25, 0
    %v44 = vsel %vm27, %v26, 0
    %46 = vmatprep.subr.mxu0 0.0
    %47 = vmatpush1.xpose.msra.mxu0 %v35
    %48 = vmatprep.subr.mxu0 0.0
    %49 = vmatpush1.xpose.msra.mxu0 %v38
    %50 = vmatprep.subr.mxu0 0.0
    %51 = vmatpush1.xpose.msra.mxu0 %v41
    %52 = vmatprep.subr.mxu0 0.0
    %53 = vmatpush1.xpose.msra.mxu0 %v44
    %54 = vmatprep.subr.mxu0 0.0
    %55 = vmatpush1.xpose.msra.mxu0 0.0
    %56 = vmatprep.subr.mxu0 0.0
    %57 = vmatpush1.xpose.msra.mxu0 0.0
    %58 = vmatprep.subr.mxu0 0.0
    %59 = vmatpush1.xpose.msra.mxu0 0.0
    %60 = vmatprep.subr.mxu0 0.0
    %61 = vmatpush1.xpose.msra.mxu0 0.0
    %62 = vmatprep.subr.mxu0 0.0
    %63 = vmatpush1.xpose.msra.mxu0 0.0
    %64 = vmatprep.subr.mxu0 0.0
    %65 = vmatpush1.xpose.msra.mxu0 0.0
    %66 = vmatprep.subr.mxu0 0.0
    %67 = vmatpush1.xpose.msra.mxu0 0.0
    %68 = vmatprep.subr.mxu0 0.0
    %69 = vmatpush1.xpose.msra.mxu0 0.0
    %70 = vmatprep.subr.mxu0 0.0
    %71 = vmatpush1.xpose.msra.mxu0 0.0
    %72 = vmatprep.subr.mxu0 0.0
    %73 = vmatpush1.xpose.msra.mxu0 0.0
    %74 = vmatprep.subr.mxu0 0.0
    %75 = vmatpush1.xpose.msra.mxu0 0.0
    %76 = vmatprep.subr.mxu0 0.0
    %77 = vmatpush1.xpose.msra.mxu0 0.0
    %78 = vmatprep.subr.mxu0 0.0
    %79 = vmatpush1.xpose.msra.mxu0 0.0
    %80 = vmatprep.subr.mxu0 0.0
    %81 = vmatpush1.xpose.msra.mxu0 0.0
    %82 = vmatprep.subr.mxu0 0.0
    %83 = vmatpush1.xpose.msra.mxu0 0.0
    %84 = vmatprep.subr.mxu0 0.0
    %85 = vmatpush1.xpose.msra.mxu0 0.0
    %86 = vmatprep.subr.mxu0 0.0
    %87 = vmatpush1.xpose.msra.mxu0 0.0
    %88 = vmatprep.subr.mxu0 0.0
    %89 = vmatpush1.xpose.msra.mxu0 0.0
    %90 = vmatprep.subr.mxu0 0.0
    %91 = vmatpush1.xpose.msra.mxu0 0.0
    %92 = vmatprep.subr.mxu0 0.0
    %93 = vmatpush1.xpose.msra.mxu0 0.0
    %94 = vmatprep.subr.mxu0 0.0
    %95 = vmatpush1.xpose.msra.mxu0 0.0
    %96 = vmatprep.subr.mxu0 0.0
    %97 = vmatpush1.xpose.msra.mxu0 0.0
    %98 = vmatprep.subr.mxu0 0.0
    %99 = vmatpush1.xpose.msra.mxu0 0.0
    %100 = vmatprep.subr.mxu0 0.0
    %101 = vmatpush1.xpose.msra.mxu0 0.0
    %102 = vmatprep.subr.mxu0 0.0
    %103 = vmatpush1.xpose.msra.mxu0 0.0
    %104 = vmatprep.subr.mxu0 0.0
    %105 = vmatpush1.xpose.msra.mxu0 0.0
    %106 = vmatprep.subr.mxu0 0.0
    %107 = vmatpush1.xpose.msra.mxu0 0.0
    %108 = vmatprep.subr.mxu0 0.0
    %109 = vmatpush1.xpose.msra.mxu0 0.0
    %110 = vmatprep.mubr.f32.mxu0 0.0
    %111 = vmatmul.mubr.f32.gmra.mrb[0].mxu0 %v29
    %v112 = vpop.f32.mrb[0].mxu0
    %v113 = vadd.f32 0.0, %v112
    %v114 = vpop.f32.mrb[0].mxu0
    %115 = vmatprep.mubr.f32.mxu0 0.0
    %116 = vmatmul.mubr.f32.gmra.mrb[0].mxu0 %v32
    %v117 = vpop.f32.mrb[0].mxu0
    %v118 = vadd.f32 0.0, %v117
    %v119 = vpop.f32.mrb[0].mxu0
    %120 = vdwg.mxu0
    %v121 = vtanh.pop %v113
    %v122 = vtanh.pop %v118
    %v123 = vld [vmem:[%s2] sm:$0xff]
    %v124 = vld [vmem:[%s2 + $0x8] sm:$0xff]
    %v125 = vld [vmem:[%s2 + $0x10] sm:$0xff]
    %v126 = vld [vmem:[%s2 + $0x18] sm:$0xff]
    %v128 = vsel %vm27, %v123, 0
    %v131 = vsel %vm27, %v124, 0
    %v134 = vsel %vm27, %v125, 0
    %v137 = vsel %vm27, %v126, 0
    %139 = vmatprep.subr.mxu0 0.0
    %140 = vmatpush1.xpose.msra.mxu0 %v128
    %141 = vmatprep.subr.mxu0 0.0
    %142 = vmatpush1.xpose.msra.mxu0 %v131
    %143 = vmatprep.subr.mxu0 0.0
    %144 = vmatpush1.xpose.msra.mxu0 %v134
    %145 = vmatprep.subr.mxu0 0.0
    %146 = vmatpush1.xpose.msra.mxu0 %v137
    %147 = vmatprep.subr.mxu0 0.0
    %148 = vmatpush1.xpose.msra.mxu0 0.0
    %149 = vmatprep.subr.mxu0 0.0
    %150 = vmatpush1.xpose.msra.mxu0 0.0
    %151 = vmatprep.subr.mxu0 0.0
    %152 = vmatpush1.xpose.msra.mxu0 0.0
    %153 = vmatprep.subr.mxu0 0.0
    %154 = vmatpush1.xpose.msra.mxu0 0.0
    %155 = vmatprep.subr.mxu0 0.0
    %156 = vmatpush1.xpose.msra.mxu0 0.0
    %157 = vmatprep.subr.mxu0 0.0
    %158 = vmatpush1.xpose.msra.mxu0 0.0
    %159 = vmatprep.subr.mxu0 0.0
    %160 = vmatpush1.xpose.msra.mxu0 0.0
    %161 = vmatprep.subr.mxu0 0.0
    %162 = vmatpush1.xpose.msra.mxu0 0.0
    %163 = vmatprep.subr.mxu0 0.0
    %164 = vmatpush1.xpose.msra.mxu0 0.0
    %165 = vmatprep.subr.mxu0 0.0
    %166 = vmatpush1.xpose.msra.mxu0 0.0
    %167 = vmatprep.subr.mxu0 0.0
    %168 = vmatpush1.xpose.msra.mxu0 0.0
    %169 = vmatprep.subr.mxu0 0.0
    %170 = vmatpush1.xpose.msra.mxu0 0.0
    %171 = vmatprep.subr.mxu0 0.0
    %172 = vmatpush1.xpose.msra.mxu0 0.0
    %173 = vmatprep.subr.mxu0 0.0
    %174 = vmatpush1.xpose.msra.mxu0 0.0
    %175 = vmatprep.subr.mxu0 0.0
    %176 = vmatpush1.xpose.msra.mxu0 0.0
    %177 = vmatprep.subr.mxu0 0.0
    %178 = vmatpush1.xpose.msra.mxu0 0.0
    %179 = vmatprep.subr.mxu0 0.0
    %180 = vmatpush1.xpose.msra.mxu0 0.0
    %181 = vmatprep.subr.mxu0 0.0
    %182 = vmatpush1.xpose.msra.mxu0 0.0
    %183 = vmatprep.subr.mxu0 0.0
    %184 = vmatpush1.xpose.msra.mxu0 0.0
    %185 = vmatprep.subr.mxu0 0.0
    %186 = vmatpush1.xpose.msra.mxu0 0.0
    %187 = vmatprep.subr.mxu0 0.0
    %188 = vmatpush1.xpose.msra.mxu0 0.0
    %189 = vmatprep.subr.mxu0 0.0
    %190 = vmatpush1.xpose.msra.mxu0 0.0
    %191 = vmatprep.subr.mxu0 0.0
    %192 = vmatpush1.xpose.msra.mxu0 0.0
    %193 = vmatprep.subr.mxu0 0.0
    %194 = vmatpush1.xpose.msra.mxu0 0.0
    %195 = vmatprep.subr.mxu0 0.0
    %196 = vmatpush1.xpose.msra.mxu0 0.0
    %197 = vmatprep.subr.mxu0 0.0
    %198 = vmatpush1.xpose.msra.mxu0 0.0
    %199 = vmatprep.subr.mxu0 0.0
    %200 = vmatpush1.xpose.msra.mxu0 0.0
    %201 = vmatprep.subr.mxu0 0.0
    %202 = vmatpush1.xpose.msra.mxu0 0.0
    %203 = vmatprep.mubr.f32.mxu0 0.0
    %204 = vmatmul.mubr.f32.gmra.mrb[0].mxu0 %v29
    %v205 = vpop.f32.mrb[0].mxu0
    %v206 = vadd.f32 0.0, %v205
    %v207 = vpop.f32.mrb[0].mxu0
    %208 = vmatprep.mubr.f32.mxu0 0.0
    %209 = vmatmul.mubr.f32.gmra.mrb[0].mxu0 %v32
    %v210 = vpop.f32.mrb[0].mxu0
    %v211 = vadd.f32 0.0, %v210
    %v212 = vpop.f32.mrb[0].mxu0
    %213 = vdwg.mxu0
    %v214 = vxor.u32 %v206, 2147483648
    %v215 = vxor.u32 %v211, 2147483648
    %v216 = vmul.f32 %v214, 1.442695
    %v217 = vpow.pop %v216
    %v218 = vmul.f32 %v215, 1.442695
    %v219 = vpow.pop %v218
    %v220 = vadd.f32 %v217, 1.0
    %v221 = vadd.f32 %v219, 1.0
    %v222 = vrcp.pop %v220
    %v223 = vmul.f32 1.0, %v222
    %v224 = vrcp.pop %v221
    %v225 = vmul.f32 1.0, %v224
    %v226 = vmul.f32 %v121, %v223
    %v227 = vmul.f32 %v122, %v225
    %v228 = vld [vmem:[%s3] sm:$0x1]
    %vm229 = vcmask 261120
    %v231 = vsel %vm229, %v228, 0
    %v234 = vsel %vm229, %v226, 0
    %236 = vmatprep.subr.mxu0 0.0
    %237 = vmatpush1.xpose.msra.mxu0 %v234
    %238 = vmatprep.subr.mxu0 0.0
    %239 = vmatpush1.xpose.msra.mxu0 0.0
    %240 = vmatprep.subr.mxu0 0.0
    %241 = vmatpush1.xpose.msra.mxu0 0.0
    %242 = vmatprep.subr.mxu0 0.0
    %243 = vmatpush1.xpose.msra.mxu0 0.0
    %244 = vmatprep.subr.mxu0 0.0
    %245 = vmatpush1.xpose.msra.mxu0 0.0
    %246 = vmatprep.subr.mxu0 0.0
    %247 = vmatpush1.xpose.msra.mxu0 0.0
    %248 = vmatprep.subr.mxu0 0.0
    %249 = vmatpush1.xpose.msra.mxu0 0.0
    %250 = vmatprep.subr.mxu0 0.0
    %251 = vmatpush1.xpose.msra.mxu0 0.0
    %252 = vmatprep.subr.mxu0 0.0
    %253 = vmatpush1.xpose.msra.mxu0 0.0
    %254 = vmatprep.subr.mxu0 0.0
    %255 = vmatpush1.xpose.msra.mxu0 0.0
    %256 = vmatprep.subr.mxu0 0.0
    %257 = vmatpush1.xpose.msra.mxu0 0.0
    %258 = vmatprep.subr.mxu0 0.0
    %259 = vmatpush1.xpose.msra.mxu0 0.0
    %260 = vmatprep.subr.mxu0 0.0
    %261 = vmatpush1.xpose.msra.mxu0 0.0
    %262 = vmatprep.subr.mxu0 0.0
    %263 = vmatpush1.xpose.msra.mxu0 0.0
    %264 = vmatprep.subr.mxu0 0.0
    %265 = vmatpush1.xpose.msra.mxu0 0.0
    %266 = vmatprep.subr.mxu0 0.0
    %267 = vmatpush1.xpose.msra.mxu0 0.0
    %268 = vmatprep.subr.mxu0 0.0
    %269 = vmatpush1.xpose.msra.mxu0 0.0
    %270 = vmatprep.subr.mxu0 0.0
    %271 = vmatpush1.xpose.msra.mxu0 0.0
    %272 = vmatprep.subr.mxu0 0.0
    %273 = vmatpush1.xpose.msra.mxu0 0.0
    %274 = vmatprep.subr.mxu0 0.0
    %275 = vmatpush1.xpose.msra.mxu0 0.0
    %276 = vmatprep.subr.mxu0 0.0
    %277 = vmatpush1.xpose.msra.mxu0 0.0
    %278 = vmatprep.subr.mxu0 0.0
    %279 = vmatpush1.xpose.msra.mxu0 0.0
    %280 = vmatprep.subr.mxu0 0.0
    %281 = vmatpush1.xpose.msra.mxu0 0.0
    %282 = vmatprep.subr.mxu0 0.0
    %283 = vmatpush1.xpose.msra.mxu0 0.0
    %284 = vmatprep.subr.mxu0 0.0
    %285 = vmatpush1.xpose.msra.mxu0 0.0
    %286 = vmatprep.subr.mxu0 0.0
    %287 = vmatpush1.xpose.msra.mxu0 0.0
    %288 = vmatprep.subr.mxu0 0.0
    %289 = vmatpush1.xpose.msra.mxu0 0.0
    %290 = vmatprep.subr.mxu0 0.0
    %291 = vmatpush1.xpose.msra.mxu0 0.0
    %292 = vmatprep.subr.mxu0 0.0
    %293 = vmatpush1.xpose.msra.mxu0 0.0
    %294 = vmatprep.subr.mxu0 0.0
    %295 = vmatpush1.xpose.msra.mxu0 0.0
    %296 = vmatprep.subr.mxu0 0.0
    %297 = vmatpush1.xpose.msra.mxu0 0.0
    %298 = vmatprep.subr.mxu0 0.0
    %299 = vmatpush1.xpose.msra.mxu0 0.0
    %300 = vmatprep.mubr.f32.mxu0 0.0
    %301 = vmatmul.mubr.f32.gmra.mrb[0].mxu0 %v231
    %v302 = vpop.f32.mrb[0].mxu0
    %v303 = vadd.f32 0.0, %v302
    %v304 = vpop.f32.mrb[0].mxu0
    %305 = vdwg.mxu0
    %v307 = vsel %vm229, %v227, 0
    %309 = vmatprep.subr.mxu0 0.0
    %310 = vmatpush1.xpose.msra.mxu0 %v307
    %311 = vmatprep.subr.mxu0 0.0
    %312 = vmatpush1.xpose.msra.mxu0 0.0
    %313 = vmatprep.subr.mxu0 0.0
    %314 = vmatpush1.xpose.msra.mxu0 0.0
    %315 = vmatprep.subr.mxu0 0.0
    %316 = vmatpush1.xpose.msra.mxu0 0.0
    %317 = vmatprep.subr.mxu0 0.0
    %318 = vmatpush1.xpose.msra.mxu0 0.0
    %319 = vmatprep.subr.mxu0 0.0
    %320 = vmatpush1.xpose.msra.mxu0 0.0
    %321 = vmatprep.subr.mxu0 0.0
    %322 = vmatpush1.xpose.msra.mxu0 0.0
    %323 = vmatprep.subr.mxu0 0.0
    %324 = vmatpush1.xpose.msra.mxu0 0.0
    %325 = vmatprep.subr.mxu0 0.0
    %326 = vmatpush1.xpose.msra.mxu0 0.0
    %327 = vmatprep.subr.mxu0 0.0
    %328 = vmatpush1.xpose.msra.mxu0 0.0
    %329 = vmatprep.subr.mxu0 0.0
    %330 = vmatpush1.xpose.msra.mxu0 0.0
    %331 = vmatprep.subr.mxu0 0.0
    %332 = vmatpush1.xpose.msra.mxu0 0.0
    %333 = vmatprep.subr.mxu0 0.0
    %334 = vmatpush1.xpose.msra.mxu0 0.0
    %335 = vmatprep.subr.mxu0 0.0
    %336 = vmatpush1.xpose.msra.mxu0 0.0
    %337 = vmatprep.subr.mxu0 0.0
    %338 = vmatpush1.xpose.msra.mxu0 0.0
    %339 = vmatprep.subr.mxu0 0.0
    %340 = vmatpush1.xpose.msra.mxu0 0.0
    %341 = vmatprep.subr.mxu0 0.0
    %342 = vmatpush1.xpose.msra.mxu0 0.0
    %343 = vmatprep.subr.mxu0 0.0
    %344 = vmatpush1.xpose.msra.mxu0 0.0
    %345 = vmatprep.subr.mxu0 0.0
    %346 = vmatpush1.xpose.msra.mxu0 0.0
    %347 = vmatprep.subr.mxu0 0.0
    %348 = vmatpush1.xpose.msra.mxu0 0.0
    %349 = vmatprep.subr.mxu0 0.0
    %350 = vmatpush1.xpose.msra.mxu0 0.0
    %351 = vmatprep.subr.mxu0 0.0
    %352 = vmatpush1.xpose.msra.mxu0 0.0
    %353 = vmatprep.subr.mxu0 0.0
    %354 = vmatpush1.xpose.msra.mxu0 0.0
    %355 = vmatprep.subr.mxu0 0.0
    %356 = vmatpush1.xpose.msra.mxu0 0.0
    %357 = vmatprep.subr.mxu0 0.0
    %358 = vmatpush1.xpose.msra.mxu0 0.0
    %359 = vmatprep.subr.mxu0 0.0
    %360 = vmatpush1.xpose.msra.mxu0 0.0
    %361 = vmatprep.subr.mxu0 0.0
    %362 = vmatpush1.xpose.msra.mxu0 0.0
    %363 = vmatprep.subr.mxu0 0.0
    %364 = vmatpush1.xpose.msra.mxu0 0.0
    %365 = vmatprep.subr.mxu0 0.0
    %366 = vmatpush1.xpose.msra.mxu0 0.0
    %367 = vmatprep.subr.mxu0 0.0
    %368 = vmatpush1.xpose.msra.mxu0 0.0
    %369 = vmatprep.subr.mxu0 0.0
    %370 = vmatpush1.xpose.msra.mxu0 0.0
    %371 = vmatprep.subr.mxu0 0.0
    %372 = vmatpush1.xpose.msra.mxu0 0.0
    %373 = vmatprep.mubr.f32.mxu0 0.0
    %374 = vmatmul.mubr.f32.gmra.mrb[0].mxu0 %v231
    %v375 = vpop.f32.mrb[0].mxu0
    %v376 = vadd.f32 0.0, %v375
    %v377 = vpop.f32.mrb[0].mxu0
    %378 = vdwg.mxu0
    %vm379 = vcmask 57344
    %v380 = vsel %vm379, %v303, -inf
    %381 = vmax.xlane.f32.xlu0 %v380
    %v382 = vpop.xlane.xlu0 %381
    %v383 = vsel %vm379, %v376, -inf
    %384 = vmax.xlane.f32.xlu0 %v383
    %v385 = vpop.xlane.xlu0 %384
    %v386 = vsub.f32 %v303, %v382
    %v387 = vsub.f32 %v376, %v385
    %v388 = vmul.f32 %v386, 1.442695
    %v389 = vpow.pop %v388
    %v390 = vmul.f32 %v387, 1.442695
    %v391 = vpow.pop %v390
    %v392 = vsel %vm379, %v389, 0.0
    %393 = vadd.xlane.f32.xlu0 %v392
    %v394 = vpop.xlane.xlu0 %393
    %v395 = vsel %vm379, %v391, 0.0
    %396 = vadd.xlane.f32.xlu0 %v395
    %v397 = vpop.xlane.xlu0 %396
    %v398 = vrcp.pop %v394
    %v399 = vrcp.pop %v397
    %v400 = vmul.f32 %v389, %v398
    %v401 = vmul.f32 %v391, %v399
    %402 = vst.msk [vmem:[#allocation4] sm:$0x1] %vm379, %v400
    %403 = vst.msk [vmem:[#allocation4 + $0x1] sm:$0x1] %vm379, %v401
    %vm404 = vcmask 64512
    %v406 = vsel %vm404, %v400, 0
    %408 = vmatprep.subr.mxu0 0.0
    %409 = vmatpush1.msra.mxu0 %v21
    %410 = vmatprep.subr.mxu0 0.0
    %411 = vmatpush1.msra.mxu0 0.0
    %412 = vmatprep.subr.mxu0 0.0
    %413 = vmatpush1.msra.mxu0 0.0
    %414 = vmatprep.subr.mxu0 0.0
    %415 = vmatpush1.msra.mxu0 0.0
    %416 = vmatprep.subr.mxu0 0.0
    %417 = vmatpush1.msra.mxu0 0.0
    %418 = vmatprep.subr.mxu0 0.0
    %419 = vmatpush1.msra.mxu0 0.0
    %420 = vmatprep.subr.mxu0 0.0
    %421 = vmatpush1.msra.mxu0 0.0
    %422 = vmatprep.subr.mxu0 0.0
    %423 = vmatpush1.msra.mxu0 0.0
    %424 = vmatprep.subr.mxu0 0.0
    %425 = vmatpush1.msra.mxu0 0.0
    %426 = vmatprep.subr.mxu0 0.0
    %427 = vmatpush1.msra.mxu0 0.0
    %428 = vmatprep.subr.mxu0 0.0
    %429 = vmatpush1.msra.mxu0 0.0
    %430 = vmatprep.subr.mxu0 0.0
    %431 = vmatpush1.msra.mxu0 0.0
    %432 = vmatprep.subr.mxu0 0.0
    %433 = vmatpush1.msra.mxu0 0.0
    %434 = vmatprep.subr.mxu0 0.0
    %435 = vmatpush1.msra.mxu0 0.0
    %436 = vmatprep.subr.mxu0 0.0
    %437 = vmatpush1.msra.mxu0 0.0
    %438 = vmatprep.subr.mxu0 0.0
    %439 = vmatpush1.msra.mxu0 0.0
    %440 = vmatprep.subr.mxu0 0.0
    %441 = vmatpush1.msra.mxu0 0.0
    %442 = vmatprep.subr.mxu0 0.0
    %443 = vmatpush1.msra.mxu0 0.0
    %444 = vmatprep.subr.mxu0 0.0
    %445 = vmatpush1.msra.mxu0 0.0
    %446 = vmatprep.subr.mxu0 0.0
    %447 = vmatpush1.msra.mxu0 0.0
    %448 = vmatprep.subr.mxu0 0.0
    %449 = vmatpush1.msra.mxu0 0.0
    %450 = vmatprep.subr.mxu0 0.0
    %451 = vmatpush1.msra.mxu0 0.0
    %452 = vmatprep.subr.mxu0 0.0
    %453 = vmatpush1.msra.mxu0 0.0
    %454 = vmatprep.subr.mxu0 0.0
    %455 = vmatpush1.msra.mxu0 0.0
    %456 = vmatprep.subr.mxu0 0.0
    %457 = vmatpush1.msra.mxu0 0.0
    %458 = vmatprep.subr.mxu0 0.0
    %459 = vmatpush1.msra.mxu0 0.0
    %460 = vmatprep.subr.mxu0 0.0
    %461 = vmatpush1.msra.mxu0 0.0
    %462 = vmatprep.subr.mxu0 0.0
    %463 = vmatpush1.msra.mxu0 0.0
    %464 = vmatprep.subr.mxu0 0.0
    %465 = vmatpush1.msra.mxu0 0.0
    %466 = vmatprep.subr.mxu0 0.0
    %467 = vmatpush1.msra.mxu0 0.0
    %468 = vmatprep.subr.mxu0 0.0
    %469 = vmatpush1.msra.mxu0 0.0
    %470 = vmatprep.subr.mxu0 0.0
    %471 = vmatpush1.msra.mxu0 0.0
    %472 = vmatprep.mubr.f32.mxu0 0.0
    %473 = vmatmul.mubr.f32.gmra.mrb[0].mxu0 %v406
    %v474 = vpop.f32.mrb[0].mxu0
    %v475 = vadd.f32 0.0, %v474
    %v476 = vpop.f32.mrb[0].mxu0
    %477 = vdwg.mxu0
    %v479 = vsel %vm404, %v401, 0
    %481 = vmatprep.subr.mxu0 0.0
    %482 = vmatpush1.msra.mxu0 %v22
    %483 = vmatprep.subr.mxu0 0.0
    %484 = vmatpush1.msra.mxu0 0.0
    %485 = vmatprep.subr.mxu0 0.0
    %486 = vmatpush1.msra.mxu0 0.0
    %487 = vmatprep.subr.mxu0 0.0
    %488 = vmatpush1.msra.mxu0 0.0
    %489 = vmatprep.subr.mxu0 0.0
    %490 = vmatpush1.msra.mxu0 0.0
    %491 = vmatprep.subr.mxu0 0.0
    %492 = vmatpush1.msra.mxu0 0.0
    %493 = vmatprep.subr.mxu0 0.0
    %494 = vmatpush1.msra.mxu0 0.0
    %495 = vmatprep.subr.mxu0 0.0
    %496 = vmatpush1.msra.mxu0 0.0
    %497 = vmatprep.subr.mxu0 0.0
    %498 = vmatpush1.msra.mxu0 0.0
    %499 = vmatprep.subr.mxu0 0.0
    %500 = vmatpush1.msra.mxu0 0.0
    %501 = vmatprep.subr.mxu0 0.0
    %502 = vmatpush1.msra.mxu0 0.0
    %503 = vmatprep.subr.mxu0 0.0
    %504 = vmatpush1.msra.mxu0 0.0
    %505 = vmatprep.subr.mxu0 0.0
    %506 = vmatpush1.msra.mxu0 0.0
    %507 = vmatprep.subr.mxu0 0.0
    %508 = vmatpush1.msra.mxu0 0.0
    %509 = vmatprep.subr.mxu0 0.0
    %510 = vmatpush1.msra.mxu0 0.0
    %511 = vmatprep.subr.mxu0 0.0
    %512 = vmatpush1.msra.mxu0 0.0
    %513 = vmatprep.subr.mxu0 0.0
    %514 = vmatpush1.msra.mxu0 0.0
    %515 = vmatprep.subr.mxu0 0.0
    %516 = vmatpush1.msra.mxu0 0.0
    %517 = vmatprep.subr.mxu0 0.0
    %518 = vmatpush1.msra.mxu0 0.0
    %519 = vmatprep.subr.mxu0 0.0
    %520 = vmatpush1.msra.mxu0 0.0
    %521 = vmatprep.subr.mxu0 0.0
    %522 = vmatpush1.msra.mxu0 0.0
    %523 = vmatprep.subr.mxu0 0.0
    %524 = vmatpush1.msra.mxu0 0.0
    %525 = vmatprep.subr.mxu0 0.0
    %526 = vmatpush1.msra.mxu0 0.0
    %527 = vmatprep.subr.mxu0 0.0
    %528 = vmatpush1.msra.mxu0 0.0
    %529 = vmatprep.subr.mxu0 0.0
    %530 = vmatpush1.msra.mxu0 0.0
    %531 = vmatprep.subr.mxu0 0.0
    %532 = vmatpush1.msra.mxu0 0.0
    %533 = vmatprep.subr.mxu0 0.0
    %534 = vmatpush1.msra.mxu0 0.0
    %535 = vmatprep.subr.mxu0 0.0
    %536 = vmatpush1.msra.mxu0 0.0
    %537 = vmatprep.subr.mxu0 0.0
    %538 = vmatpush1.msra.mxu0 0.0
    %539 = vmatprep.subr.mxu0 0.0
    %540 = vmatpush1.msra.mxu0 0.0
    %541 = vmatprep.subr.mxu0 0.0
    %542 = vmatpush1.msra.mxu0 0.0
    %543 = vmatprep.subr.mxu0 0.0
    %544 = vmatpush1.msra.mxu0 0.0
    %545 = vmatprep.mubr.f32.mxu0 0.0
    %546 = vmatmul.mubr.f32.gmra.mrb[0].mxu0 %v479
    %v547 = vpop.f32.mrb[0].mxu0
    %v548 = vadd.f32 0.0, %v547
    %v549 = vpop.f32.mrb[0].mxu0
    %550 = vdwg.mxu0
    %vm551 = vcmask 122880
    %552 = vst.msk [vmem:[#allocation2] sm:$0x1] %vm551, %v475
    %553 = vst.msk [vmem:[#allocation2 + $0x1] sm:$0x1] %vm551, %v548
    // Predicated region
    $region18: #{tpu_custom_call.1} parent=1 // pred_check
      _
    $region19: #{tpu_custom_call.1} parent=1 // pred_check_branch
      %555 = sbr.rel (0) target = $region21
    $region20: #{tpu_custom_call.1} parent=1 // pred_region
      %s557 = ssub.s32 32, 32
      %558 = vsyncadd [#allocation3], %s557
      %s559 = sshll.u32 [#allocation2], 4
      %s560 = int_to_ptr.vmem [resolvable:$true] %s559
      %565 = dma.vmem_to_hbm [thread:$0]  %s560, 32, %s4, [#allocation3], 16, 16, 1
    $region21: #{tpu_custom_call.1} parent=1 // pred_fallthru
      _
    // Predicated region
    $region22: #{tpu_custom_call.1} parent=1 // pred_check
      _
    $region23: #{tpu_custom_call.1} parent=1 // pred_check_branch
      %567 = sbr.rel (0) target = $region25
    $region24: #{tpu_custom_call.1} parent=1 // pred_region
      %s569 = ssub.s32 32, 32
      %570 = vsyncadd [#allocation5], %s569
      %s571 = sshll.u32 [#allocation4], 4
      %s572 = int_to_ptr.vmem [resolvable:$true] %s571
      %577 = dma.vmem_to_hbm [thread:$0]  %s572, 32, %s5, [#allocation5], 16, 16, 1
    $region25: #{tpu_custom_call.1} parent=1 // pred_fallthru
      _
    // Predicated region
    $region26: #{tpu_custom_call.1} parent=1 // pred_check
      _
    $region27: #{tpu_custom_call.1} parent=1 // pred_check_branch
      %579 = sbr.rel (0) target = $region29
    $region28: #{tpu_custom_call.1} parent=1 // pred_region
      %580 = dma.done [#allocation3], 32
    $region29: #{tpu_custom_call.1} parent=1 // pred_fallthru
      _
    // Predicated region
    $region30: #{tpu_custom_call.1} parent=1 // pred_check
      _
    $region31: #{tpu_custom_call.1} parent=1 // pred_check_branch
      %582 = sbr.rel (0) target = $region33
    $region32: #{tpu_custom_call.1} parent=1 // pred_region
      %583 = dma.done [#allocation5], 32
    $region33: #{tpu_custom_call.1} parent=1 // pred_fallthru
      _
    %584 = vsyncpa [#allocation3], 1
    %585 = vsyncpa [#allocation5], 1

</llo_original>
